<compile_context>
chip_gen: v7x
topology: tpu7x:2x2x1
jax: 0.10.0
libtpu: 0.0.40
codegen_flags: <defaults>
</compile_context>

<pallas_src>
import functools

import jax
import jax.numpy as jnp
from jax import lax
from jax.experimental import pallas as pl
from jax.experimental.pallas import tpu as pltpu


def _conv_bn_silu_kernel(x_ref, w_ref, b_ref, o_ref, *, k, pad, H, W, act,
                         use_mxu):
    """Fused k x k conv (stride 1, 'same' pad) + folded BN + SiLU for one image.

    x_ref : (C1, P)        one image, P = padded H*W flat spatial on the lane axis
    w_ref : (C2, k*k*C1)   BN-folded weights, tap-major / input-channel-minor
    b_ref : (C2, 1)        BN-folded bias
    o_ref : (C2, P)        output
    """
    x = x_ref[...]
    w = w_ref[...]
    C1, P = x.shape
    C2 = o_ref.shape[0]

    # Destination pixel (row, col) for every lane, computed once (no mask input).
    lane = lax.broadcasted_iota(jnp.int32, (1, P), 1)
    row = lane // W
    col = lane - row * W

    def tap_input(dy, dx):
        """Shifted + boundary-masked (C1, P) input for tap (dy, dx)."""
        oy, ox = dy - pad, dx - pad
        shift = oy * W + ox
        # xs[p] = x[p + shift] (circular; wrapped lanes are zeroed by the mask)
        xs = x if shift == 0 else pltpu.roll(x, shift=(-shift) % P, axis=1)
        if oy == 0 and ox == 0:
            return xs
        valid = ((row + oy >= 0) & (row + oy < H) &
                 (col + ox >= 0) & (col + ox < W))
        return xs * valid.astype(xs.dtype)     # one vmul, not cmp+select

    bias = b_ref[...]                          # (C2, 1) folded BN bias
    if use_mxu:
        # im2col LHS (k*k*C1, P) from the same rolls, one MXU contraction.
        rows = jnp.concatenate(
            [tap_input(dy, dx) for dy in range(k) for dx in range(k)], axis=0)
        acc = jnp.dot(w, rows, preferred_element_type=jnp.float32) + bias
    else:
        # Tiny-channel regime: k*k*C1 VPU broadcast-FMAs, acc seeded with bias.
        acc = jnp.broadcast_to(bias, (C2, P))
        for dy in range(k):                    # static unrolled taps
            for dx in range(k):
                xm = tap_input(dy, dx)
                base = (dy * k + dx) * C1
                for ci in range(C1):
                    acc = acc + w[:, base + ci:base + ci + 1] * xm[ci:ci + 1, :]

    if act:
        acc = acc * jax.nn.sigmoid(acc)        # SiLU (sigmoid on the EUP)
    o_ref[...] = acc.astype(o_ref.dtype)       # single dense lane-aligned store


@functools.partial(jax.jit, static_argnames=("stride", "act"))
def conv_forward(x_nchw, weight, gamma, beta, mean, var, *, stride=1, act=True,
                 eps=1e-5):
    """PyTorch Conv.forward: SiLU(BN(Conv2d(x))), eval-mode BN, bias=False, groups=1.

    x_nchw : (N, C1, H, W) f32; weight: (C2, C1, k, k) f32 (OIHW); BN params: (C2,).
    """
    N, C1, H, W = x_nchw.shape
    C2, C1w, k, k2 = weight.shape
    assert C1w == C1 and k == k2 and (k % 2 == 1), "groups=1, odd k only"
    # TODO(synk): groups > 1 (grouped / depthwise conv) is not implemented here.
    pad = k // 2                                            # autopad(k)

    # Fold eval-mode BatchNorm into the conv weights and a per-channel bias.
    scale = gamma / jnp.sqrt(var + eps)                     # (C2,)
    bias = (beta - mean * scale).reshape(C2, 1)
    w_f = weight * scale[:, None, None, None]               # (C2, C1, k, k)
    w_flat = jnp.transpose(w_f, (0, 2, 3, 1)).reshape(C2, k * k * C1)

    # Lane-dense per-image layout (N, C, H*W): reshape only, no activation transpose.
    P_img = H * W
    P = ((P_img + 127) // 128) * 128                        # lane-dense store
    x3 = x_nchw.reshape(N, C1, P_img)
    if P != P_img:
        x3 = jnp.pad(x3, ((0, 0), (0, 0), (0, P - P_img)))

    # MXU im2col path for realistic channel counts, VPU FMAs for tiny ones.
    use_mxu = (C2 >= 16) and (k * k * C1 >= 16)

    kern = functools.partial(_conv_bn_silu_kernel, k=k, pad=pad, H=H, W=W,
                             act=act, use_mxu=use_mxu)
    flops = 2 * N * C2 * P * k * k * C1
    bytes_accessed = 4 * (N * C1 * P + C2 * k * k * C1 + C2 + N * C2 * P)

    out3 = pl.pallas_call(
        kern,
        out_shape=jax.ShapeDtypeStruct((N, C2, P), jnp.float32),
        grid_spec=pltpu.PrefetchScalarGridSpec(
            num_scalar_prefetch=0,
            grid=(N,),                                      # one image per grid step
            in_specs=[
                pl.BlockSpec((pl.Squeezed(), C1, P), lambda n: (n, 0, 0)),
                pl.BlockSpec((C2, k * k * C1), lambda n: (0, 0)),
                pl.BlockSpec((C2, 1), lambda n: (0, 0)),
            ],
            out_specs=pl.BlockSpec((pl.Squeezed(), C2, P), lambda n: (n, 0, 0)),
        ),
        compiler_params=pltpu.CompilerParams(
            dimension_semantics=("parallel",),              # images independent (2 TCs on v7x)
            vmem_limit_bytes=32 * 1024 * 1024),             # explicit (v5e default is 16 MiB)
        cost_estimate=pl.CostEstimate(
            flops=flops,
            transcendentals=(N * C2 * P) if act else 0,
            bytes_accessed=bytes_accessed),
    )(x3, w_flat, bias)

    out = out3[:, :, :P_img].reshape(N, C2, H, W)           # crop lane padding (free reshape)
    if stride > 1:
        # For odd k with autopad, the strided conv output equals the stride-1 'same'
        # output subsampled at [::s, ::s].
        # TODO(synk): compute strided outputs in-kernel to avoid the redundant work.
        out = out[:, :, ::stride, ::stride]
    return out


def _reference_forward(x, weight, gamma, beta, mean, var, stride=1, act=True,
                       eps=1e-5):
    """Pure-JAX reference for verification (full-precision conv)."""
    k = weight.shape[2]
    pad = k // 2
    y = lax.conv_general_dilated(
        x, weight, window_strides=(stride, stride),
        padding=((pad, pad), (pad, pad)),
        dimension_numbers=("NCHW", "OIHW", "NCHW"),
        precision=lax.Precision.HIGHEST)
    scale = gamma / jnp.sqrt(var + eps)
    bias = beta - mean * scale
    y = y * scale[None, :, None, None] + bias[None, :, None, None]
    if act:
        y = y * jax.nn.sigmoid(y)
    return y


if __name__ == "__main__":
    N, H, W = 2, 16, 16

    key = jax.random.PRNGKey(0)
    kx, k1, k2, k3 = jax.random.split(key, 4)

    def bn_params(k, c):
        ka, kb, kc, kd = jax.random.split(k, 4)
        gamma = 1.0 + 0.1 * jax.random.normal(ka, (c,), jnp.float32)
        beta = 0.1 * jax.random.normal(kb, (c,), jnp.float32)
        mean = 0.1 * jax.random.normal(kc, (c,), jnp.float32)
        var = jnp.abs(1.0 + 0.1 * jax.random.normal(kd, (c,), jnp.float32))
        return gamma, beta, mean, var

    # (c1, c2, k, s, key, tol):
    #   default Conv (k=1,s=1), typical YOLO downsample (k=3,s=2) -> VPU path,
    #   realistic channels (c1=32,c2=64,k=3) -> MXU im2col path (looser tol: the
    #   MXU may run f32 matmuls as bf16 passes).
    configs = (
        (4, 8, 1, 1, k1, 1e-4),
        (4, 8, 3, 2, k2, 1e-4),
        (32, 64, 3, 1, k3, 5e-2),
    )
    for (c1, c2, ksize, s, kk, tol) in configs:
        kw, kb, kxi = jax.random.split(kk, 3)
        x = jax.random.normal(kxi, (N, c1, H, W), jnp.float32)
        weight = 0.1 * jax.random.normal(kw, (c2, c1, ksize, ksize), jnp.float32)
        gamma, beta, mean, var = bn_params(kb, c2)

        out = conv_forward(x, weight, gamma, beta, mean, var, stride=s, act=True)
        out = jax.block_until_ready(out)

        ref = _reference_forward(x, weight, gamma, beta, mean, var, stride=s,
                                 act=True)
        assert out.shape == ref.shape, (out.shape, ref.shape)
        max_err = float(jnp.max(jnp.abs(out - ref)))
        assert jnp.allclose(out, ref, atol=tol, rtol=tol), (c1, c2, ksize, s, max_err)

    print("KERNEL_OK")
</pallas_src>

<mosaic_0001>
module attributes {stable_mosaic.version = 11 : i64} {
  func.func @_conv_bn_silu_kernel(%arg0: i32, %arg1: memref<1x4x256xf32, #tpu.memory_space<vmem>>, %arg2: memref<8x4xf32, #tpu.memory_space<vmem>>, %arg3: memref<8x1xf32, #tpu.memory_space<vmem>>, %arg4: memref<1x8x256xf32, #tpu.memory_space<vmem>>) attributes {dimension_semantics = [#tpu.dimension_semantics<parallel>], iteration_bounds = array<i64: 2>, scalar_prefetch = 0 : i64, scratch_operands = 0 : i64, tpu.core_type = #tpu.core_type<tc>, window_params = [{transform_indices = @transform_0, window_bounds = array<i64: 1, 4, 256>}, {pipeline_mode = #tpu.pipeline_mode<synchronous>, transform_indices = @transform_1, window_bounds = array<i64: 8, 4>}, {pipeline_mode = #tpu.pipeline_mode<synchronous>, transform_indices = @transform_2, window_bounds = array<i64: 8, 1>}, {transform_indices = @transform_3, window_bounds = array<i64: 1, 8, 256>}]} {
    %c0 = arith.constant 0 : index
    %c0_0 = arith.constant 0 : index
    %c0_1 = arith.constant 0 : index
    %0 = vector.load %arg1[%c0, %c0_0, %c0_1] : memref<1x4x256xf32, #tpu.memory_space<vmem>>, vector<1x4x256xf32>
    %1 = vector.shape_cast %0 : vector<1x4x256xf32> to vector<4x256xf32>
    %c0_2 = arith.constant 0 : index
    %c0_3 = arith.constant 0 : index
    %2 = vector.load %arg2[%c0_2, %c0_3] : memref<8x4xf32, #tpu.memory_space<vmem>>, vector<8x4xf32>
    %c0_4 = arith.constant 0 : index
    %c0_5 = arith.constant 0 : index
    %3 = vector.load %arg3[%c0_4, %c0_5] : memref<8x1xf32, #tpu.memory_space<vmem>>, vector<8x1xf32>
    %4 = vector.shape_cast %3 : vector<8x1xf32> to vector<8x1xf32>
    %5 = vector.broadcast %4 : vector<8x1xf32> to vector<8x256xf32>
    %6 = vector.extract_strided_slice %2 {offsets = [0, 0], sizes = [8, 1], strides = [1, 1]} : vector<8x4xf32> to vector<8x1xf32>
    %7 = vector.extract_strided_slice %1 {offsets = [0, 0], sizes = [1, 256], strides = [1, 1]} : vector<4x256xf32> to vector<1x256xf32>
    %8 = vector.broadcast %6 : vector<8x1xf32> to vector<8x256xf32>
    %9 = vector.broadcast %7 : vector<1x256xf32> to vector<8x256xf32>
    %10 = arith.mulf %8, %9 : vector<8x256xf32>
    %11 = arith.addf %5, %10 : vector<8x256xf32>
    %12 = vector.extract_strided_slice %2 {offsets = [0, 1], sizes = [8, 1], strides = [1, 1]} : vector<8x4xf32> to vector<8x1xf32>
    %13 = vector.extract_strided_slice %1 {offsets = [1, 0], sizes = [1, 256], strides = [1, 1]} : vector<4x256xf32> to vector<1x256xf32>
    %14 = vector.broadcast %12 : vector<8x1xf32> to vector<8x256xf32>
    %15 = vector.broadcast %13 : vector<1x256xf32> to vector<8x256xf32>
    %16 = arith.mulf %14, %15 : vector<8x256xf32>
    %17 = arith.addf %11, %16 : vector<8x256xf32>
    %18 = vector.extract_strided_slice %2 {offsets = [0, 2], sizes = [8, 1], strides = [1, 1]} : vector<8x4xf32> to vector<8x1xf32>
    %19 = vector.extract_strided_slice %1 {offsets = [2, 0], sizes = [1, 256], strides = [1, 1]} : vector<4x256xf32> to vector<1x256xf32>
    %20 = vector.broadcast %18 : vector<8x1xf32> to vector<8x256xf32>
    %21 = vector.broadcast %19 : vector<1x256xf32> to vector<8x256xf32>
    %22 = arith.mulf %20, %21 : vector<8x256xf32>
    %23 = arith.addf %17, %22 : vector<8x256xf32>
    %24 = vector.extract_strided_slice %2 {offsets = [0, 3], sizes = [8, 1], strides = [1, 1]} : vector<8x4xf32> to vector<8x1xf32>
    %25 = vector.extract_strided_slice %1 {offsets = [3, 0], sizes = [1, 256], strides = [1, 1]} : vector<4x256xf32> to vector<1x256xf32>
    %26 = vector.broadcast %24 : vector<8x1xf32> to vector<8x256xf32>
    %27 = vector.broadcast %25 : vector<1x256xf32> to vector<8x256xf32>
    %28 = arith.mulf %26, %27 : vector<8x256xf32>
    %29 = arith.addf %23, %28 : vector<8x256xf32>
    %30 = arith.negf %29 : vector<8x256xf32>
    %31 = math.exp %30 : vector<8x256xf32>
    %cst = arith.constant 1.000000e+00 : f32
    %32 = vector.broadcast %cst : f32 to vector<8x256xf32>
    %33 = arith.addf %32, %31 : vector<8x256xf32>
    %34 = arith.divf %32, %33 : vector<8x256xf32>
    %35 = arith.mulf %29, %34 : vector<8x256xf32>
    %c0_6 = arith.constant 0 : index
    %c0_7 = arith.constant 0 : index
    %c0_8 = arith.constant 0 : index
    %36 = vector.load %arg4[%c0_6, %c0_7, %c0_8] : memref<1x8x256xf32, #tpu.memory_space<vmem>>, vector<1x8x256xf32>
    %37 = vector.shape_cast %36 : vector<1x8x256xf32> to vector<8x256xf32>
    %38 = vector.shape_cast %35 : vector<8x256xf32> to vector<1x8x256xf32>
    tpu.vector_store %arg4[%c0_6, %c0_7, %c0_8], %38 {strides = array<i32>} : memref<1x8x256xf32, #tpu.memory_space<vmem>>, vector<1x8x256xf32>,
    return
  }
  func.func @transform_0(%arg0: i32) -> (i32, i32, i32) {
    %c0_i32 = arith.constant 0 : i32
    %c0_i32_0 = arith.constant 0 : i32
    %c0_i32_1 = arith.constant 0 : i32
    return %arg0, %c0_i32, %c0_i32_0 : i32, i32, i32
  }
  func.func @transform_1(%arg0: i32) -> (i32, i32) {
    %c0_i32 = arith.constant 0 : i32
    %c0_i32_0 = arith.constant 0 : i32
    %c0_i32_1 = arith.constant 0 : i32
    return %c0_i32, %c0_i32_0 : i32, i32
  }
  func.func @transform_2(%arg0: i32) -> (i32, i32) {
    %c0_i32 = arith.constant 0 : i32
    %c0_i32_0 = arith.constant 0 : i32
    %c0_i32_1 = arith.constant 0 : i32
    return %c0_i32, %c0_i32_0 : i32, i32
  }
  func.func @transform_3(%arg0: i32) -> (i32, i32, i32) {
    %c0_i32 = arith.constant 0 : i32
    %c0_i32_0 = arith.constant 0 : i32
    %c0_i32_1 = arith.constant 0 : i32
    return %arg0, %c0_i32, %c0_i32_0 : i32, i32, i32
  }
}

</mosaic_0001>

<llo_original>
// kernel: conv_forward.1
$region0: #{conv_forward.1}
  #allocation0 [shape = 'u32[]', space=smem, size = 0x4, offset = 0x4, fixed_abs, tag = 'smem constant byte address 0x4 - core index']
  #allocation1 [shape = 'u32[144,128]{1,0:T(1,128)}', space=vmem, size = 0x12000, scoped, tag = 'internal scratch']
  %s0 = inlined_call_operand.vmem [shape: f32[2,4,256], index: 0, kind: input, shape index: {}]
  %s1 = inlined_call_operand.vmem [shape: f32[8,4], index: 1, kind: input, shape index: {}]
  %s2 = inlined_call_operand.vmem [shape: f32[8,1], index: 2, kind: input, shape index: {}]
  %s3 = inlined_call_operand.vmem [shape: f32[2,8,256], index: 3, kind: output, shape index: {}]
  %s4 = sld [smem:[#allocation0]]
  $region45: #{conv_forward.1} parent=0
    _
  %s6 = ssub.s32 1, %s4
  %s7 = scalar_select 0, %s6, %s4
  loop: start=0, step=1, limit=4
  $region2: #{conv_forward.1} parent=0 // loop_pre_header
    _
  $region3: #{conv_forward.1} parent=0 // loop_header
    %s9 = sphi 0, %s13
    %p10 = scmp.ge.s32.totalorder %s9, 4
    %s19 = sphi 0, %s21
    %s22 = sphi 0, %s19
    %s23 = sphi 0, %s22
    %s39 = sphi 0, %s23
    %s43 = sphi 0, %s43
    %s45 = sphi 0, %s43
    %s46 = sphi 0, %s45
    %s60 = sphi 0, %s46
    %s64 = sphi 0, %s64
    %s66 = sphi 0, %s64
    %s67 = sphi 0, %s66
    %s81 = sphi 0, %s67
    %s87 = sphi 0, %s89
    %s90 = sphi 0, %s87
    %s91 = sphi 0, %s90
    %s107 = sphi 0, %s91
  $region4: #{conv_forward.1} parent=0 // loop_header_branch
    %12 = sbr.rel (%p10) target = $region8
  $region5: #{conv_forward.1} parent=0 // loop_body
    %s14 = ssub.s32 %s9, 1
    %s15 = ssub.s32 %s9, 2
    %s16 = sadd.s32 %s9, 1
    %s17 = ssub.s32 %s9, %s16
    %p18 = scmp.eq.s32.totalorder %s17, 0
    %s20 = sadd.s32 %s19, 1
    %s21 = scalar_select %p18, %s19, %s20
    %p24 = pneg %p18
    %p25 = scmp.eq.s32.totalorder %s9, 1
    %p26 = por %p24, %p25
    %p27 = scmp.ne.s32.totalorder %s19, %s22
    %p28 = scmp.eq.s32.totalorder %s9, 0
    %p29 = por %p27, %p28
    %p30 = scmp.ne.s32.totalorder %s19, %s22
    %p31 = scmp.eq.s32.totalorder %s14, 1
    %p32 = por %p30, %p31
    %p33 = scmp.ne.s32.totalorder %s22, %s23
    %p34 = scmp.eq.s32.totalorder %s14, 0
    %p35 = por %p33, %p34
    %p36 = scmp.ne.s32.totalorder %s22, %s23
    %p37 = scmp.eq.s32.totalorder %s15, 1
    %p38 = por %p36, %p37
    %p40 = scmp.ne.s32.totalorder %s23, %s39
    %p41 = scmp.eq.s32.totalorder %s15, 0
    %p42 = por %p40, %p41
    %s44 = sadd.s32 %s43, 1
    %p47 = scmp.eq.s32.totalorder %s9, 1
    %p48 = scmp.ne.s32.totalorder %s43, %s45
    %p49 = scmp.eq.s32.totalorder %s9, 0
    %p50 = por %p48, %p49
    %p51 = scmp.ne.s32.totalorder %s43, %s45
    %p52 = scmp.eq.s32.totalorder %s14, 1
    %p53 = por %p51, %p52
    %p54 = scmp.ne.s32.totalorder %s45, %s46
    %p55 = scmp.eq.s32.totalorder %s14, 0
    %p56 = por %p54, %p55
    %p57 = scmp.ne.s32.totalorder %s45, %s46
    %p58 = scmp.eq.s32.totalorder %s15, 1
    %p59 = por %p57, %p58
    %p61 = scmp.ne.s32.totalorder %s46, %s60
    %p62 = scmp.eq.s32.totalorder %s15, 0
    %p63 = por %p61, %p62
    %s65 = sadd.s32 %s64, 1
    %p68 = scmp.eq.s32.totalorder %s9, 1
    %p69 = scmp.ne.s32.totalorder %s64, %s66
    %p70 = scmp.eq.s32.totalorder %s9, 0
    %p71 = por %p69, %p70
    %p72 = scmp.ne.s32.totalorder %s64, %s66
    %p73 = scmp.eq.s32.totalorder %s14, 1
    %p74 = por %p72, %p73
    %p75 = scmp.ne.s32.totalorder %s66, %s67
    %p76 = scmp.eq.s32.totalorder %s14, 0
    %p77 = por %p75, %p76
    %p78 = scmp.ne.s32.totalorder %s66, %s67
    %p79 = scmp.eq.s32.totalorder %s15, 1
    %p80 = por %p78, %p79
    %p82 = scmp.ne.s32.totalorder %s67, %s81
    %p83 = scmp.eq.s32.totalorder %s15, 0
    %p84 = por %p82, %p83
    %s85 = ssub.s32 %s9, %s16
    %p86 = scmp.eq.s32.totalorder %s85, 0
    %s88 = sadd.s32 %s87, 1
    %s89 = scalar_select %p86, %s87, %s88
    %p92 = pneg %p86
    %p93 = scmp.eq.s32.totalorder %s9, 1
    %p94 = por %p92, %p93
    %p95 = scmp.ne.s32.totalorder %s87, %s90
    %p96 = scmp.eq.s32.totalorder %s9, 0
    %p97 = por %p95, %p96
    %p98 = scmp.ne.s32.totalorder %s87, %s90
    %p99 = scmp.eq.s32.totalorder %s14, 1
    %p100 = por %p98, %p99
    %p101 = scmp.ne.s32.totalorder %s90, %s91
    %p102 = scmp.eq.s32.totalorder %s14, 0
    %p103 = por %p101, %p102
    %p104 = scmp.ne.s32.totalorder %s90, %s91
    %p105 = scmp.eq.s32.totalorder %s15, 1
    %p106 = por %p104, %p105
    %p108 = scmp.ne.s32.totalorder %s91, %s107
    %p109 = scmp.eq.s32.totalorder %s15, 0
    %p110 = por %p108, %p109
    %p111 = scmp.le.s32.totalorder 1, %s9
    %p112 = scmp.lt.s32.totalorder %s9, 3
    %p113 = pnand %p111, %p112
    %p114 = pneg %p113
    // Predicated region
    $region9: #{conv_forward.1} parent=5 // pred_check
      _
    $region10: #{conv_forward.1} parent=5 // pred_check_branch
      %116 = sbr.rel (%p113) target = $region12
    $region11: #{conv_forward.1} parent=5 // pred_region
      %s117 = ssub.s32 %s9, 1
      // Predicated region
      $region13: #{conv_forward.1} parent=11 // pred_check
        %p118 = pneg %p56
      $region14: #{conv_forward.1} parent=11 // pred_check_branch
        %120 = sbr.rel (%p118) target = $region16
      $region15: #{conv_forward.1} parent=11 // pred_region
        _
      $region16: #{conv_forward.1} parent=11 // pred_fallthru
        _
      // Predicated region
      $region17: #{conv_forward.1} parent=11 // pred_check
        %p121 = pneg %p77
      $region18: #{conv_forward.1} parent=11 // pred_check_branch
        %123 = sbr.rel (%p121) target = $region20
      $region19: #{conv_forward.1} parent=11 // pred_region
        _
      $region20: #{conv_forward.1} parent=11 // pred_fallthru
        _
    $region12: #{conv_forward.1} parent=5 // pred_fallthru
      _
    %p124 = scmp.lt.s32.totalorder %s9, 2
    // Predicated region
    $region21: #{conv_forward.1} parent=5 // pred_check
      %p125 = pneg %p124
    $region22: #{conv_forward.1} parent=5 // pred_check_branch
      %127 = sbr.rel (%p125) target = $region24
    $region23: #{conv_forward.1} parent=5 // pred_region
      // Predicated region
      $region25: #{conv_forward.1} parent=23 // pred_check
        %p128 = pneg %p29
      $region26: #{conv_forward.1} parent=23 // pred_check_branch
        %130 = sbr.rel (%p128) target = $region28
      $region27: #{conv_forward.1} parent=23 // pred_region
        %p131 = scmp.lt.s32.totalorder %s9, 1
        %s132 = scalar_select %p131, %s9, 1
        %s133 = smul.addr %s132, 2
        %s134 = smul.addr %s133, 4
        %s135 = scalar_lea.vmem %s0, %s134
      $region28: #{conv_forward.1} parent=23 // pred_fallthru
        _
    $region24: #{conv_forward.1} parent=5 // pred_fallthru
      _
    %p136 = scmp.le.s32.totalorder 1, %s9
    %p137 = scmp.lt.s32.totalorder %s9, 3
    %p138 = pnand %p136, %p137
    %p139 = pneg %p138
    // Predicated region
    $region29: #{conv_forward.1} parent=5 // pred_check
      _
    $region30: #{conv_forward.1} parent=5 // pred_check_branch
      %141 = sbr.rel (%p138) target = $region32
    $region31: #{conv_forward.1} parent=5 // pred_region
      %s142 = ssub.s32 %s9, 1
      %p143 = scmp.lt.s32.totalorder %s14, 1
      %s144 = scalar_select %p143, %s14, 1
      %s145 = smul.addr %s144, 2
      %s146 = smul.addr %s145, 4
      %s147 = scalar_lea.vmem %s0, %s146
      %p148 = pneg %p35
      %p149 = pneg %p32
      %p150 = pneg %p56
      %p151 = pneg %p53
      %p152 = pneg %p77
      %p153 = pneg %p74
      %p154 = pneg %p103
      %p155 = pneg %p100
      %p156 = scmp.lt.s32.totalorder %s14, 1
      %s157 = scalar_select %p156, %s14, 1
      %s158 = smul.addr %s157, 2
      %s159 = smul.addr %s158, 8
      %s160 = scalar_lea.vmem %s3, %s159
      %p161 = scmp.lt.s32.totalorder %s14, 1
      %s162 = scalar_select %p161, %s14, 1
      %s163 = smul.addr %s162, 2
      %s164 = smul.addr %s163, 4
      %s165 = scalar_lea.vmem %s0, %s164
      %p166 = scmp.lt.s32.totalorder %s14, 1
      %s167 = scalar_select %p166, %s14, 1
      %s168 = smul.addr %s167, 2
      %s169 = smul.addr %s168, 8
      %s170 = scalar_lea.vmem %s3, %s169
      %v171 = vld [vmem:[%s165] sm:$0xff]
      %v172 = vld [vmem:[%s1] sm:$0xff]
      %v173 = vld [vmem:[%s2] sm:$0xff]
      %175 = vset.pattern.permute.xlu0 0
      %176 = vperm.xlu0 %175, %v173
      %v177 = vpop.permute.xlu0 %176
      %180 = vset.pattern.permute.xlu0 0
      %181 = vperm.xlu0 %180, %v172
      %v182 = vpop.permute.xlu0 %181
      %v185 = vlaneseq
      %v186 = vshrl.u32 %v185, 7
      %v187 = vsub.s32 0, %v186
      %v188 = vrot.slane %v171, %v187
      %v189 = vlaneseq
      %v190 = vshrl.u32 %v189, 7
      %v191 = vsub.s32 4, %v190
      %v192 = vrot.slane %v171, %v191
      %v195 = vlaneseq
      %v196 = vshrl.u32 %v195, 7
      %v197 = vsub.s32 0, %v196
      %v198 = vrot.slane %v188, %v197
      %v199 = vlaneseq
      %v200 = vshrl.u32 %v199, 7
      %v201 = vsub.s32 0, %v200
      %v202 = vrot.slane %v192, %v201
      %v203 = vmul.f32 %v182, %v198
      %v204 = vmul.f32 %v182, %v202
      %v205 = vadd.f32 %v177, %v203
      %v206 = vadd.f32 %v177, %v204
      %207 = vset.pattern.permute.xlu0 1
      %208 = vperm.xlu0 %207, %v172
      %v209 = vpop.permute.xlu0 %208
      %v211 = vlaneseq
      %v212 = vshrl.u32 %v211, 7
      %v213 = vsub.s32 1, %v212
      %v214 = vrot.slane %v171, %v213
      %v215 = vlaneseq
      %v216 = vshrl.u32 %v215, 7
      %v217 = vsub.s32 5, %v216
      %v218 = vrot.slane %v171, %v217
      %v221 = vlaneseq
      %v222 = vshrl.u32 %v221, 7
      %v223 = vsub.s32 1, %v222
      %v224 = vrot.slane %v214, %v223
      %v225 = vlaneseq
      %v226 = vshrl.u32 %v225, 7
      %v227 = vsub.s32 1, %v226
      %v228 = vrot.slane %v218, %v227
      %v229 = vmul.f32 %v209, %v224
      %v230 = vmul.f32 %v209, %v228
      %v231 = vadd.f32 %v205, %v229
      %v232 = vadd.f32 %v206, %v230
      %233 = vset.pattern.permute.xlu0 2
      %234 = vperm.xlu0 %233, %v172
      %v235 = vpop.permute.xlu0 %234
      %v237 = vlaneseq
      %v238 = vshrl.u32 %v237, 7
      %v239 = vsub.s32 2, %v238
      %v240 = vrot.slane %v171, %v239
      %v241 = vlaneseq
      %v242 = vshrl.u32 %v241, 7
      %v243 = vsub.s32 6, %v242
      %v244 = vrot.slane %v171, %v243
      %v247 = vlaneseq
      %v248 = vshrl.u32 %v247, 7
      %v249 = vsub.s32 2, %v248
      %v250 = vrot.slane %v240, %v249
      %v251 = vlaneseq
      %v252 = vshrl.u32 %v251, 7
      %v253 = vsub.s32 2, %v252
      %v254 = vrot.slane %v244, %v253
      %v255 = vmul.f32 %v235, %v250
      %v256 = vmul.f32 %v235, %v254
      %v257 = vadd.f32 %v231, %v255
      %v258 = vadd.f32 %v232, %v256
      %259 = vset.pattern.permute.xlu0 3
      %260 = vperm.xlu0 %259, %v172
      %v261 = vpop.permute.xlu0 %260
      %v263 = vlaneseq
      %v264 = vshrl.u32 %v263, 7
      %v265 = vsub.s32 3, %v264
      %v266 = vrot.slane %v171, %v265
      %v267 = vlaneseq
      %v268 = vshrl.u32 %v267, 7
      %v269 = vsub.s32 7, %v268
      %v270 = vrot.slane %v171, %v269
      %v273 = vlaneseq
      %v274 = vshrl.u32 %v273, 7
      %v275 = vsub.s32 3, %v274
      %v276 = vrot.slane %v266, %v275
      %v277 = vlaneseq
      %v278 = vshrl.u32 %v277, 7
      %v279 = vsub.s32 3, %v278
      %v280 = vrot.slane %v270, %v279
      %v281 = vmul.f32 %v261, %v276
      %v282 = vmul.f32 %v261, %v280
      %v283 = vadd.f32 %v257, %v281
      %v284 = vadd.f32 %v258, %v282
      %v285 = vxor.u32 %v283, 2147483648
      %v286 = vxor.u32 %v284, 2147483648
      %v287 = vmul.f32 %v285, 1.442695
      %v288 = vpow.pop %v287
      %v289 = vmul.f32 %v286, 1.442695
      %v290 = vpow.pop %v289
      %v291 = vadd.f32 %v288, 1.0
      %v292 = vadd.f32 %v290, 1.0
      %v293 = vrcp.pop %v291
      %v294 = vmul.f32 1.0, %v293
      %v295 = vrcp.pop %v292
      %v296 = vmul.f32 1.0, %v295
      %v297 = vmul.f32 %v283, %v294
      %v298 = vmul.f32 %v284, %v296
      %299 = vst [vmem:[%s170] sm:$0xff] %v297
      %300 = vst [vmem:[%s170 + $0x8] sm:$0xff] %v298
      %p301 = scmp.lt.s32.totalorder %s14, 1
      %s302 = scalar_select %p301, %s14, 1
      %s303 = smul.addr %s302, 2
      %s304 = smul.addr %s303, 8
      %s305 = scalar_lea.vmem %s3, %s304
      // Predicated region
      $region33: #{conv_forward.1} parent=31 // pred_check
        %p306 = pneg %p100
      $region34: #{conv_forward.1} parent=31 // pred_check_branch
        %308 = sbr.rel (%p306) target = $region36
      $region35: #{conv_forward.1} parent=31 // pred_region
        _
      $region36: #{conv_forward.1} parent=31 // pred_fallthru
        _
    $region32: #{conv_forward.1} parent=5 // pred_fallthru
      _
    %p309 = scmp.le.s32.totalorder 2, %s9
    // Predicated region
    $region37: #{conv_forward.1} parent=5 // pred_check
      %p310 = pneg %p309
    $region38: #{conv_forward.1} parent=5 // pred_check_branch
      %312 = sbr.rel (%p310) target = $region40
    $region39: #{conv_forward.1} parent=5 // pred_region
      %s313 = ssub.s32 %s9, 2
      // Predicated region
      $region41: #{conv_forward.1} parent=39 // pred_check
        %p314 = pneg %p106
      $region42: #{conv_forward.1} parent=39 // pred_check_branch
        %316 = sbr.rel (%p314) target = $region44
      $region43: #{conv_forward.1} parent=39 // pred_region
        %p317 = scmp.lt.s32.totalorder %s15, 1
        %s318 = scalar_select %p317, %s15, 1
        %s319 = smul.addr %s318, 2
        %s320 = smul.addr %s319, 8
        %s321 = scalar_lea.vmem %s3, %s320
      $region44: #{conv_forward.1} parent=39 // pred_fallthru
        _
    $region40: #{conv_forward.1} parent=5 // pred_fallthru
      _
  $region6: #{conv_forward.1} parent=0 // loop_footer
    %s13 = sadd.s32 1, %s9
  $region7: #{conv_forward.1} parent=0 // loop_footer_branch
    %8 = sbr.rel target = $region3
  $region8: #{conv_forward.1} parent=0 // loop_exit
    _

</llo_original>
